<compile_context>
chip_gen: v6e
topology: v6e:2x2x1
jax: 0.10.0
libtpu: 0.0.40
codegen_flags: <defaults>
</compile_context>

<pallas_src>
import functools

import jax
import jax.numpy as jnp
from jax.experimental import pallas as pl
from jax.experimental.pallas import tpu as pltpu

LANE = 128
_NEG_BIG = -1e30          # stand-in for -inf when masking padded key columns


# ----------------------------------------------------------------------------
# Helpers
# ----------------------------------------------------------------------------
def _round_up(x, m):
    return (x + m - 1) // m * m


def _pad_axis(x, axis, mult):
    pad = (-x.shape[axis]) % mult
    if pad == 0:
        return x
    widths = [(0, 0)] * x.ndim
    widths[axis] = (0, pad)
    return jnp.pad(x, widths)


def _tpu_config():
    """Generation-aware tile / scoped-VMEM choices.

    v7x has only 64 MiB physical VMEM per TensorCore -> smaller point tile and
    a <= 40 MiB scoped limit; v5e/v6e (128 MiB) get larger tiles."""
    cap = 64 * 1024 * 1024
    try:
        cap = getattr(pltpu.get_tpu_info(), "vmem_capacity_bytes", cap)
    except Exception:
        pass
    if cap <= 64 * 1024 * 1024:
        return {"tile_points": 128, "vmem_limit": 40 * 1024 * 1024}
    return {"tile_points": 512, "vmem_limit": 64 * 1024 * 1024}


# ----------------------------------------------------------------------------
# Pallas kernel 1: pairwise "negative squared distance" matrix for knn
# pd[b, i, j] = 2<p_i, p_j> - ||p_i||^2 - ||p_j||^2   (PyTorch knn formula).
# Key dim is padded to a multiple of 128 (lane-dense stores); padded columns
# are masked in-kernel so top_k never selects them.
# ----------------------------------------------------------------------------
def _pairwise_dist_kernel(q_ref, p_ref, o_ref, *, n_real):
    q = q_ref[0].astype(jnp.float32)                               # (Tq, D)
    p = p_ref[0].astype(jnp.float32)                               # (Np, D)
    g = jax.lax.dot_general(q, p, (((1,), (1,)), ((), ())),
                            preferred_element_type=jnp.float32)    # (Tq, Np)
    qq = jnp.sum(q * q, axis=-1, keepdims=True)                    # (Tq, 1)
    pp = jnp.sum(p * p, axis=-1, keepdims=True)                    # (Np, 1)
    pd = 2.0 * g - qq - pp.T
    key = jax.lax.broadcasted_iota(jnp.int32, pd.shape, 1)
    o_ref[0] = jnp.where(key < n_real, pd, _NEG_BIG)


def pairwise_distance(points_bnd, n_real, *, vmem_limit):
    """points_bnd: (B, Npad, D) zero-padded to Npad % 128 == 0."""
    B, Np, D = points_bnd.shape
    tq = min(LANE, Np)
    kernel = functools.partial(_pairwise_dist_kernel, n_real=n_real)
    return pl.pallas_call(
        kernel,
        out_shape=jax.ShapeDtypeStruct((B, Np, Np), jnp.float32),
        grid=(B, Np // tq),
        in_specs=[pl.BlockSpec((1, tq, D), lambda b, i: (b, i, 0)),
                  pl.BlockSpec((1, Np, D), lambda b, i: (b, 0, 0))],
        out_specs=pl.BlockSpec((1, tq, Np), lambda b, i: (b, i, 0)),
        compiler_params=pltpu.CompilerParams(
            dimension_semantics=("parallel", "parallel"),
            vmem_limit_bytes=vmem_limit),
    )(points_bnd, points_bnd)


def knn_indices(points_bcn, k, *, vmem_limit):
    """points_bcn: (B, D, N) as in the PyTorch module.  Returns (B, N, k)."""
    B, D, N = points_bcn.shape
    pts = jnp.transpose(points_bcn, (0, 2, 1))                     # (B, N, D)
    npad = _round_up(N, LANE)
    pts = jnp.pad(pts, ((0, 0), (0, npad - N), (0, 0)))
    pd = pairwise_distance(pts, N, vmem_limit=vmem_limit)          # (B, Npad, Npad)
    # TODO(synk): in-kernel partial top-(k+1) per query tile would avoid the
    # O(N^2) HBM round trip; plain XLA top_k on the lane-dense matrix for now.
    _, idx = jax.lax.top_k(pd[:, :N, :], k + 1)
    # Drop the first column: self-distance (exactly 0) is the maximum, same as
    # the PyTorch knn (duplicate points tie and may swap, also same as PyTorch).
    return idx[:, :, 1:]


# ----------------------------------------------------------------------------
# Pallas kernel 2: EdgeConv MLP with fused in-VMEM neighbour gather.
#   gmat = onehot(nbr_idx) - onehot(ctr_idx)  ->  diff = gmat @ feat (exact)
#   layer 0: relu(diff @ W0n + ctr @ W0c + b0)   (center term once per point)
#   layers 1..2: row matmuls (+ folded BN) + relu; 1/k mean folded into layer 2
#   output: relu(shortcut + sum_k(...))          (shortcut fused with W0c matmul)
# ----------------------------------------------------------------------------
def _edgeconv_kernel(ids_ref, feat_ref, wcs_ref, bcs_ref, w0n_ref,
                     w1_ref, b1_ref, w2_ref, b2_ref, o_ref, *, k, out_feat):
    t = o_ref.shape[1]                                             # points / tile
    npad = feat_ref.shape[1]
    h0p = w0n_ref.shape[1]                                         # padded H0

    feat_all = feat_ref[0]                                         # (Npad, C) bf16
    row0 = pl.multiple_of(pl.program_id(1) * t, 8)
    ctr = feat_ref[0, pl.ds(row0, t), :]                           # (t, C) centers

    # Per-point fused matmul: centers against [W0_center | W_shortcut].
    cs = jnp.dot(ctr, wcs_ref[...],
                 preferred_element_type=jnp.float32) + bcs_ref[...]
    ctr0 = cs[:, :h0p]                                             # layer-0 center term
    sc = cs[:, h0p:]                                               # shortcut branch

    # In-VMEM neighbour gather: (onehot(nbr) - onehot(ctr)) @ feat gives the
    # (neighbour - center) edge rows directly -- no HBM diff tensor.
    ids = ids_ref[0]                                               # (t*K, 2) int32
    col = jax.lax.broadcasted_iota(jnp.int32, (t * k, npad), 1)
    nbr_oh = jnp.where(ids[:, 0:1] == col, 1.0, 0.0)
    ctr_oh = jnp.where(ids[:, 1:2] == col, 1.0, 0.0)
    gmat = (nbr_oh - ctr_oh).astype(jnp.bfloat16)                  # values {-1,0,1}
    diff = jnp.dot(gmat, feat_all,
                   preferred_element_type=jnp.float32)             # (t*K, C)

    # Layer 0: relu((nbr-ctr) @ W0n + ctr @ W0c + b0); the per-point center
    # term is broadcast over the K neighbour slots.
    x = jnp.dot(diff.astype(jnp.bfloat16), w0n_ref[...],
                preferred_element_type=jnp.float32)                # (t*K, H0p)
    x = jnp.maximum(x.reshape(t, k, h0p) + ctr0[:, None, :], 0.0)
    x = x.reshape(t * k, h0p)

    # Layers 1..2 (1x1 conv + folded BN + relu); w2/b2 carry the 1/K mean fold.
    for w_ref, b_ref in ((w1_ref, b1_ref), (w2_ref, b2_ref)):
        x = jnp.dot(x.astype(jnp.bfloat16), w_ref[...],
                    preferred_element_type=jnp.float32) + b_ref[...]
        x = jnp.maximum(x, 0.0)

    fts = jnp.sum(x.reshape(t, k, x.shape[-1]), axis=1)            # mean over K
    out = jnp.maximum(sc + fts, 0.0)                               # sc_act(sc + fts)
    o_ref[0] = out[:, :out_feat].astype(o_ref.dtype)


def edgeconv_mlp(idx, feat_bnc, wcs, bcs, w0n, w1, b1, w2, b2,
                 *, k, out_feat, tile_points, vmem_limit):
    """idx: (B, N, K) knn indices.  feat_bnc: (B, N, C) features.
    Returns (B, N, out_feat) bf16 EdgeConv output rows."""
    B, N, C = feat_bnc.shape
    npad8 = _round_up(N, 8)
    # Cap the point tile so the in-VMEM one-hot gather matrix stays ~<= 4 MiB.
    t_cap = max(8, (4 * 1024 * 1024 // (4 * k * npad8)) // 8 * 8)
    t = max(8, min(tile_points, npad8, t_cap))
    npad = _round_up(N, t)

    feat_p = jnp.pad(feat_bnc, ((0, 0), (0, npad - N), (0, 0))).astype(jnp.bfloat16)
    idx_p = jnp.pad(idx, ((0, 0), (0, npad - N), (0, 0))).astype(jnp.int32)
    nbr_ids = idx_p.reshape(B, npad * k)
    ctr_ids = jnp.broadcast_to(
        jnp.repeat(jnp.arange(npad, dtype=jnp.int32), k)[None, :], (B, npad * k))
    ids = jnp.stack([nbr_ids, ctr_ids], axis=-1)                   # (B, Npad*K, 2)

    const2 = lambda b, i: (0, 0)                                   # noqa: E731
    kernel = functools.partial(_edgeconv_kernel, k=k, out_feat=out_feat)
    # TODO(synk): on v7x, single-buffer the constant-index weight inputs
    # (pipeline_mode=pl.Buffered(1)) to shave their double-buffer VMEM.
    out = pl.pallas_call(
        kernel,
        out_shape=jax.ShapeDtypeStruct((B, npad, out_feat), jnp.bfloat16),
        grid=(B, npad // t),
        in_specs=[
            pl.BlockSpec((1, t * k, 2), lambda b, i: (b, i, 0)),   # [nbr_id, ctr_id]
            pl.BlockSpec((1, npad, C), lambda b, i: (b, 0, 0)),    # resident feat slab
            pl.BlockSpec(wcs.shape, const2),                       # resident params
            pl.BlockSpec(bcs.shape, const2),
            pl.BlockSpec(w0n.shape, const2),
            pl.BlockSpec(w1.shape, const2),
            pl.BlockSpec(b1.shape, const2),
            pl.BlockSpec(w2.shape, const2),
            pl.BlockSpec(b2.shape, const2),
        ],
        out_specs=pl.BlockSpec((1, t, out_feat), lambda b, i: (b, i, 0)),
        compiler_params=pltpu.CompilerParams(
            dimension_semantics=("parallel", "parallel"),
            vmem_limit_bytes=vmem_limit),
    )(ids, feat_p, wcs, bcs, w0n, w1, b1, w2, b2)
    return out[:, :N, :]


# ----------------------------------------------------------------------------
# Parameter prep (plain JAX)
# ----------------------------------------------------------------------------
def fold_bn(w, gamma, beta, mean, var, eps=1e-5):
    # conv (no bias) followed by eval-mode BatchNorm -> scaled weight + bias
    scale = gamma / jnp.sqrt(var + eps)
    return w * scale[None, :], (beta - mean * scale)[None, :]


def prepare_mlp_params(Ws, Bs, wsc, bsc, c_in, k):
    """Split W0 into center/neighbour halves, fuse the center half with the
    shortcut conv, fold the 1/k neighbour mean into the last layer, zero-pad
    only the hidden/output dims of the VMEM-resident weights to 128 lanes,
    cast matmul weights to bf16 (biases stay f32)."""
    w0c, w0n = Ws[0][:c_in], Ws[0][c_in:]

    def outpad(w):                                   # pad output (lane) dim
        return _pad_axis(w, 1, LANE)

    wcs = jnp.concatenate([outpad(w0c), outpad(wsc)], axis=1).astype(jnp.bfloat16)
    bcs = jnp.concatenate([outpad(Bs[0]), outpad(bsc)], axis=1).astype(jnp.float32)
    w0n_p = outpad(w0n).astype(jnp.bfloat16)
    w1_p = outpad(_pad_axis(Ws[1], 0, LANE)).astype(jnp.bfloat16)
    b1_p = outpad(Bs[1]).astype(jnp.float32)
    inv_k = 1.0 / k
    w2_p = outpad(_pad_axis(Ws[2] * inv_k, 0, LANE)).astype(jnp.bfloat16)
    b2_p = outpad(Bs[2] * inv_k).astype(jnp.float32)
    return wcs, bcs, w0n_p, w1_p, b1_p, w2_p, b2_p


# ----------------------------------------------------------------------------
if __name__ == "__main__":
    B, N, K = 2, 16, 4          # batch, num_points, neighbours
    D_PTS, C_IN = 3, 4          # point-coord dims, input feature dims
    OUT_FEATS = (8, 8, 16)      # in_feat != out_feats[-1] -> shortcut conv used
    EPS = 1e-5

    keys = iter(jax.random.split(jax.random.PRNGKey(0), 32))

    points = jax.random.normal(next(keys), (B, D_PTS, N), jnp.float32)
    features = jax.random.normal(next(keys), (B, C_IN, N), jnp.float32)

    # Deterministic parameters: conv weights stored as (C_in, C_out), BN folded.
    dims = [2 * C_IN] + list(OUT_FEATS)
    Ws, Bs = [], []
    for i in range(len(OUT_FEATS)):
        w = 0.3 * jax.random.normal(next(keys), (dims[i], dims[i + 1]), jnp.float32)
        gamma = 1.0 + 0.1 * jax.random.normal(next(keys), (dims[i + 1],), jnp.float32)
        beta = 0.1 * jax.random.normal(next(keys), (dims[i + 1],), jnp.float32)
        mean = 0.1 * jax.random.normal(next(keys), (dims[i + 1],), jnp.float32)
        var = jax.random.uniform(next(keys), (dims[i + 1],), jnp.float32, 0.5, 1.5)
        wf, bf_ = fold_bn(w, gamma, beta, mean, var, EPS)
        Ws.append(wf)
        Bs.append(bf_)

    wsc = 0.3 * jax.random.normal(next(keys), (C_IN, OUT_FEATS[-1]), jnp.float32)
    g_ = 1.0 + 0.1 * jax.random.normal(next(keys), (OUT_FEATS[-1],), jnp.float32)
    b_ = 0.1 * jax.random.normal(next(keys), (OUT_FEATS[-1],), jnp.float32)
    m_ = 0.1 * jax.random.normal(next(keys), (OUT_FEATS[-1],), jnp.float32)
    v_ = jax.random.uniform(next(keys), (OUT_FEATS[-1],), jnp.float32, 0.5, 1.5)
    wsc_f, bsc_f = fold_bn(wsc, g_, b_, m_, v_, EPS)

    cfg = _tpu_config()

    # ---- forward pass ----
    idx = knn_indices(points, K, vmem_limit=cfg["vmem_limit"])     # (B, N, K)
    feat_bnc = jnp.transpose(features, (0, 2, 1))                  # (B, N, C)
    params = prepare_mlp_params(Ws, Bs, wsc_f, bsc_f, C_IN, K)
    out_rows = edgeconv_mlp(idx, feat_bnc, *params, k=K,
                            out_feat=OUT_FEATS[-1],
                            tile_points=cfg["tile_points"],
                            vmem_limit=cfg["vmem_limit"])          # (B, N, Cout) bf16
    out = jnp.transpose(out_rows, (0, 2, 1))                       # (B, Cout, N)
    jax.block_until_ready(out)

    # ---- pure-JAX references for sanity checking ----
    pts_bnd = jnp.transpose(points, (0, 2, 1))
    sq = jnp.sum(pts_bnd ** 2, axis=-1)
    pd_ref = (2.0 * jnp.einsum("bnd,bmd->bnm", pts_bnd, pts_bnd)
              - sq[:, :, None] - sq[:, None, :])
    pts_pad = jnp.pad(pts_bnd, ((0, 0), (0, _round_up(N, LANE) - N), (0, 0)))
    pd_kernel = pairwise_distance(pts_pad, N, vmem_limit=cfg["vmem_limit"])
    assert jnp.allclose(pd_kernel[:, :N, :N], pd_ref, atol=1e-2, rtol=1e-2)

    # EdgeConv reference in the original cat([ctr, nbr-ctr]) layout (unsplit,
    # unpadded weights), mirroring the kernel's bf16 matmul-operand storage.
    fpn = jnp.transpose(features, (0, 2, 1)).astype(jnp.bfloat16)
    nbr_r = jax.vmap(lambda f, i: f[i])(fpn, idx)
    ctr_r = jnp.broadcast_to(fpn[:, :, None, :], nbr_r.shape)
    diff_r = (nbr_r.astype(jnp.float32)
              - ctr_r.astype(jnp.float32)).astype(jnp.bfloat16)
    x_r = jnp.concatenate([ctr_r, diff_r], axis=-1).reshape(B * N * K, 2 * C_IN)
    for w_r, bias_r in zip(Ws, Bs):
        x_r = jnp.maximum(
            jnp.dot(x_r.astype(jnp.bfloat16), w_r.astype(jnp.bfloat16),
                    preferred_element_type=jnp.float32) + bias_r, 0.0)
    fts_ref = x_r.reshape(B * N, K, -1).mean(axis=1)
    feat_rows = jnp.transpose(features, (0, 2, 1)).reshape(B * N, C_IN)
    sc_ref = jnp.dot(feat_rows.astype(jnp.bfloat16), wsc_f.astype(jnp.bfloat16),
                     preferred_element_type=jnp.float32) + bsc_f
    ref_rows = jnp.maximum(sc_ref + fts_ref, 0.0)
    got_rows = out_rows.reshape(B * N, OUT_FEATS[-1]).astype(jnp.float32)
    assert jnp.allclose(got_rows, ref_rows, atol=3e-2, rtol=3e-2)

    print("KERNEL_OK")
</pallas_src>

<mosaic_0001>
module attributes {stable_mosaic.version = 11 : i64} {
  func.func @_pairwise_dist_kernel(%arg0: i32, %arg1: i32, %arg2: memref<1x128x3xf32, #tpu.memory_space<vmem>>, %arg3: memref<1x128x3xf32, #tpu.memory_space<vmem>>, %arg4: memref<1x128x128xf32, #tpu.memory_space<vmem>>) attributes {dimension_semantics = [#tpu.dimension_semantics<parallel>, #tpu.dimension_semantics<parallel>], iteration_bounds = array<i64: 2, 1>, scalar_prefetch = 0 : i64, scratch_operands = 0 : i64, tpu.core_type = #tpu.core_type<tc>, window_params = [{transform_indices = @transform_0, window_bounds = array<i64: 1, 128, 3>}, {transform_indices = @transform_1, window_bounds = array<i64: 1, 128, 3>}, {transform_indices = @transform_2, window_bounds = array<i64: 1, 128, 128>}]} {
    %c0 = arith.constant 0 : index
    %c0_0 = arith.constant 0 : index
    %c0_1 = arith.constant 0 : index
    %0 = vector.load %arg2[%c0, %c0_0, %c0_1] : memref<1x128x3xf32, #tpu.memory_space<vmem>>, vector<1x128x3xf32>
    %1 = vector.shape_cast %0 : vector<1x128x3xf32> to vector<128x3xf32>
    %c0_2 = arith.constant 0 : index
    %c0_3 = arith.constant 0 : index
    %c0_4 = arith.constant 0 : index
    %2 = vector.load %arg3[%c0_2, %c0_3, %c0_4] : memref<1x128x3xf32, #tpu.memory_space<vmem>>, vector<1x128x3xf32>
    %3 = vector.shape_cast %2 : vector<1x128x3xf32> to vector<128x3xf32>
    %cst = arith.constant dense<0.000000e+00> : vector<128x128xf32>
    %4 = tpu.matmul %1, %3, %cst {dimension_numbers = #tpu.dot_dimension_numbers<[1], [1], [0], [0], [0, 0, 1, 0], [], []>} : vector<128x3xf32>, vector<128x3xf32>, vector<128x128xf32> -> vector<128x128xf32>
    %5 = arith.mulf %1, %1 : vector<128x3xf32>
    %cst_5 = arith.constant dense<0.000000e+00> : vector<128xf32>
    %6 = vector.multi_reduction <add>, %5, %cst_5 [1] : vector<128x3xf32> to vector<128xf32>
    %7 = vector.shape_cast %6 : vector<128xf32> to vector<128x1xf32>
    %8 = arith.mulf %3, %3 : vector<128x3xf32>
    %cst_6 = arith.constant dense<0.000000e+00> : vector<128xf32>
    %9 = vector.multi_reduction <add>, %8, %cst_6 [1] : vector<128x3xf32> to vector<128xf32>
    %10 = vector.shape_cast %9 : vector<128xf32> to vector<128x1xf32>
    %cst_7 = arith.constant 2.000000e+00 : f32
    %11 = vector.broadcast %cst_7 : f32 to vector<128x128xf32>
    %12 = arith.mulf %11, %4 : vector<128x128xf32>
    %13 = vector.broadcast %7 : vector<128x1xf32> to vector<128x128xf32>
    %14 = arith.subf %12, %13 : vector<128x128xf32>
    %15 = tpu.transpose %10, [1, 0] : vector<128x1xf32> -> vector<1x128xf32>
    %16 = vector.broadcast %15 : vector<1x128xf32> to vector<128x128xf32>
    %17 = arith.subf %14, %16 : vector<128x128xf32>
    %18 = tpu.iota {dimensions = array<i32: 1>} : vector<128x128xi32>
    %c16_i32 = arith.constant 16 : i32
    %19 = vector.broadcast %c16_i32 : i32 to vector<128x128xi32>
    %20 = arith.cmpi slt, %18, %19 : vector<128x128xi32>
    %cst_8 = arith.constant -1.000000e+30 : f32
    %21 = vector.broadcast %cst_8 : f32 to vector<128x128xf32>
    %22 = arith.select %20, %17, %21 : vector<128x128xi1>, vector<128x128xf32>
    %c0_9 = arith.constant 0 : index
    %c0_10 = arith.constant 0 : index
    %c0_11 = arith.constant 0 : index
    %23 = vector.load %arg4[%c0_9, %c0_10, %c0_11] : memref<1x128x128xf32, #tpu.memory_space<vmem>>, vector<1x128x128xf32>
    %24 = vector.shape_cast %23 : vector<1x128x128xf32> to vector<128x128xf32>
    %25 = vector.shape_cast %22 : vector<128x128xf32> to vector<1x128x128xf32>
    tpu.vector_store %arg4[%c0_9, %c0_10, %c0_11], %25 {strides = array<i32>} : memref<1x128x128xf32, #tpu.memory_space<vmem>>, vector<1x128x128xf32>,
    return
  }
  func.func @transform_0(%arg0: i32, %arg1: i32) -> (i32, i32, i32) {
    %c0_i32 = arith.constant 0 : i32
    %c0_i32_0 = arith.constant 0 : i32
    return %arg0, %arg1, %c0_i32 : i32, i32, i32
  }
  func.func @transform_1(%arg0: i32, %arg1: i32) -> (i32, i32, i32) {
    %c0_i32 = arith.constant 0 : i32
    %c0_i32_0 = arith.constant 0 : i32
    %c0_i32_1 = arith.constant 0 : i32
    return %arg0, %c0_i32, %c0_i32_0 : i32, i32, i32
  }
  func.func @transform_2(%arg0: i32, %arg1: i32) -> (i32, i32, i32) {
    %c0_i32 = arith.constant 0 : i32
    %c0_i32_0 = arith.constant 0 : i32
    return %arg0, %arg1, %c0_i32 : i32, i32, i32
  }
}

</mosaic_0001>

<llo_original>
// kernel: tpu_custom_call.1
$region0: #{tpu_custom_call.1}
  #allocation0 [shape = 'u32[]', space=smem, size = 0x4, offset = 0x4, fixed_abs, tag = 'smem constant byte address 0x4 - core index']
  #allocation1 [shape = 'u32[144,128]{1,0:T(1,128)}', space=vmem, size = 0x12000, scoped, tag = 'internal scratch']
  %s0 = inlined_call_operand.vmem [shape: f32[2,128,3], index: 0, kind: input, shape index: {}]
  %s1 = inlined_call_operand.vmem [shape: f32[2,128,3], index: 1, kind: input, shape index: {}]
  %s2 = inlined_call_operand.hbm [shape: f32[2,128,128], index: 2, kind: output, shape index: {}]
  %s3 = sld [smem:[#allocation0]]
  $region41: #{tpu_custom_call.1} parent=0
    _
  %s5 = ssub.s32 1, %s3
  %s6 = scalar_select 0, %s5, %s3
  $region1: #{tpu_custom_call.1} parent=0
    #allocation2 [shape = 'u8[131072]{0}', space=vmem, size = 0x20000, scoped, tag = 'output window, operand 0']
    #allocation3 [shape = 's32[2]{0}', space=sflag, size = 0x8, scoped, tag = 'scoped memory for tpu_custom_call.1']
    %7 = vsyncpa [#allocation3], 0
    %s8 = scalar_lea.sflag [#allocation3], 1
    %9 = vsyncpa %s8, 0
    loop: start=0, step=1, limit=4
    $region2: #{tpu_custom_call.1} parent=1 // loop_pre_header
      _
    $region3: #{tpu_custom_call.1} parent=1 // loop_header
      %s11 = sphi 0, %s15
      %p12 = scmp.ge.s32.totalorder %s11, 4
      %s18 = sphi 0, %s30
      %s19 = sphi 0, %s26
      %s20 = sphi 0, %s18
      %s21 = sphi 0, %s19
      %s22 = sphi 0, %s20
      %s23 = sphi 0, %s21
      %s35 = sphi 0, %s37
      %s38 = sphi 0, %s35
      %s39 = sphi 0, %s38
      %s55 = sphi 0, %s39
      %s61 = sphi 0, %s63
      %s64 = sphi 0, %s61
      %s65 = sphi 0, %s64
      %s81 = sphi 0, %s65
      %s89 = sphi 0, %s91
      %s92 = sphi 0, %s89
      %s93 = sphi 0, %s92
      %s109 = sphi 0, %s93
    $region4: #{tpu_custom_call.1} parent=1 // loop_header_branch
      %14 = sbr.rel (%p12) target = $region8
    $region5: #{tpu_custom_call.1} parent=1 // loop_body
      %s16 = ssub.s32 %s11, 1
      %s17 = ssub.s32 %s11, 2
      %s24 = sadd.s32 1, %s19
      %p25 = scmp.ge.s32.totalorder %s24, 1
      %s26 = scalar_select %p25, 0, %s24
      %s27 = sadd.s32 1, %s18
      %s28 = scalar_select %p25, %s27, %s18
      %p29 = scmp.ge.s32.totalorder %s28, 2
      %s30 = scalar_select %p29, 0, %s28
      %s31 = ssub.s32 %s18, %s30
      %s32 = ssub.s32 %s19, %s26
      %s33 = sor.u32 %s31, %s32
      %p34 = scmp.eq.s32.totalorder %s33, 0
      %s36 = sadd.s32 %s35, 1
      %s37 = scalar_select %p34, %s35, %s36
      %p40 = pneg %p34
      %p41 = scmp.eq.s32.totalorder %s11, 1
      %p42 = por %p40, %p41
      %p43 = scmp.ne.s32.totalorder %s35, %s38
      %p44 = scmp.eq.s32.totalorder %s11, 0
      %p45 = por %p43, %p44
      %p46 = scmp.ne.s32.totalorder %s35, %s38
      %p47 = scmp.eq.s32.totalorder %s16, 1
      %p48 = por %p46, %p47
      %p49 = scmp.ne.s32.totalorder %s38, %s39
      %p50 = scmp.eq.s32.totalorder %s16, 0
      %p51 = por %p49, %p50
      %p52 = scmp.ne.s32.totalorder %s38, %s39
      %p53 = scmp.eq.s32.totalorder %s17, 1
      %p54 = por %p52, %p53
      %p56 = scmp.ne.s32.totalorder %s39, %s55
      %p57 = scmp.eq.s32.totalorder %s17, 0
      %p58 = por %p56, %p57
      %s59 = ssub.s32 %s18, %s30
      %p60 = scmp.eq.s32.totalorder %s59, 0
      %s62 = sadd.s32 %s61, 1
      %s63 = scalar_select %p60, %s61, %s62
      %p66 = pneg %p60
      %p67 = scmp.eq.s32.totalorder %s11, 1
      %p68 = por %p66, %p67
      %p69 = scmp.ne.s32.totalorder %s61, %s64
      %p70 = scmp.eq.s32.totalorder %s11, 0
      %p71 = por %p69, %p70
      %p72 = scmp.ne.s32.totalorder %s61, %s64
      %p73 = scmp.eq.s32.totalorder %s16, 1
      %p74 = por %p72, %p73
      %p75 = scmp.ne.s32.totalorder %s64, %s65
      %p76 = scmp.eq.s32.totalorder %s16, 0
      %p77 = por %p75, %p76
      %p78 = scmp.ne.s32.totalorder %s64, %s65
      %p79 = scmp.eq.s32.totalorder %s17, 1
      %p80 = por %p78, %p79
      %p82 = scmp.ne.s32.totalorder %s65, %s81
      %p83 = scmp.eq.s32.totalorder %s17, 0
      %p84 = por %p82, %p83
      %s85 = ssub.s32 %s18, %s30
      %s86 = ssub.s32 %s19, %s26
      %s87 = sor.u32 %s85, %s86
      %p88 = scmp.eq.s32.totalorder %s87, 0
      %s90 = sadd.s32 %s89, 1
      %s91 = scalar_select %p88, %s89, %s90
      %p94 = pneg %p88
      %p95 = scmp.eq.s32.totalorder %s11, 1
      %p96 = por %p94, %p95
      %p97 = scmp.ne.s32.totalorder %s89, %s92
      %p98 = scmp.eq.s32.totalorder %s11, 0
      %p99 = por %p97, %p98
      %p100 = scmp.ne.s32.totalorder %s89, %s92
      %p101 = scmp.eq.s32.totalorder %s16, 1
      %p102 = por %p100, %p101
      %p103 = scmp.ne.s32.totalorder %s92, %s93
      %p104 = scmp.eq.s32.totalorder %s16, 0
      %p105 = por %p103, %p104
      %p106 = scmp.ne.s32.totalorder %s92, %s93
      %p107 = scmp.eq.s32.totalorder %s17, 1
      %p108 = por %p106, %p107
      %p110 = scmp.ne.s32.totalorder %s93, %s109
      %p111 = scmp.eq.s32.totalorder %s17, 0
      %p112 = por %p110, %p111
      %p113 = scmp.le.s32.totalorder 1, %s11
      %p114 = scmp.lt.s32.totalorder %s11, 3
      %p115 = pnand %p113, %p114
      %p116 = pneg %p115
      // Predicated region
      $region9: #{tpu_custom_call.1} parent=5 // pred_check
        _
      $region10: #{tpu_custom_call.1} parent=5 // pred_check_branch
        %118 = sbr.rel (%p115) target = $region12
      $region11: #{tpu_custom_call.1} parent=5 // pred_region
        %s119 = ssub.s32 %s11, 1
      $region12: #{tpu_custom_call.1} parent=5 // pred_fallthru
        _
      %p120 = scmp.lt.s32.totalorder %s11, 2
      // Predicated region
      $region13: #{tpu_custom_call.1} parent=5 // pred_check
        %p121 = pneg %p120
      $region14: #{tpu_custom_call.1} parent=5 // pred_check_branch
        %123 = sbr.rel (%p121) target = $region16
      $region15: #{tpu_custom_call.1} parent=5 // pred_region
        // Predicated region
        $region17: #{tpu_custom_call.1} parent=15 // pred_check
          %p124 = pneg %p45
        $region18: #{tpu_custom_call.1} parent=15 // pred_check_branch
          %126 = sbr.rel (%p124) target = $region20
        $region19: #{tpu_custom_call.1} parent=15 // pred_region
          %s127 = smul.u32 16, %s19
          %p128 = scmp.lt.s32.totalorder %s18, 1
          %s129 = scalar_select %p128, %s18, 1
          %p130 = scmp.lt.s32.totalorder %s127, 15
          %s131 = scalar_select %p130, %s127, 15
          %s132 = smul.addr %s129, 16
          %s133 = sadd.s32 %s131, %s132
          %s134 = smul.addr %s133, 8
          %s135 = scalar_lea.vmem %s0, %s134
          %s136 = smul.u32 16, %s19
        $region20: #{tpu_custom_call.1} parent=15 // pred_fallthru
          _
        // Predicated region
        $region21: #{tpu_custom_call.1} parent=15 // pred_check
          %p137 = pneg %p71
        $region22: #{tpu_custom_call.1} parent=15 // pred_check_branch
          %139 = sbr.rel (%p137) target = $region24
        $region23: #{tpu_custom_call.1} parent=15 // pred_region
          %p140 = scmp.lt.s32.totalorder %s18, 1
          %s141 = scalar_select %p140, %s18, 1
          %s142 = smul.addr %s141, 16
          %s143 = smul.addr %s142, 8
          %s144 = scalar_lea.vmem %s1, %s143
        $region24: #{tpu_custom_call.1} parent=15 // pred_fallthru
          _
      $region16: #{tpu_custom_call.1} parent=5 // pred_fallthru
        _
      %p145 = scmp.le.s32.totalorder 1, %s11
      %p146 = scmp.lt.s32.totalorder %s11, 3
      %p147 = pnand %p145, %p146
      %p148 = pneg %p147
      // Predicated region
      $region25: #{tpu_custom_call.1} parent=5 // pred_check
        _
      $region26: #{tpu_custom_call.1} parent=5 // pred_check_branch
        %150 = sbr.rel (%p147) target = $region28
      $region27: #{tpu_custom_call.1} parent=5 // pred_region
        %s151 = ssub.s32 %s11, 1
        %s152 = smul.u32 16, %s21
        %p153 = scmp.lt.s32.totalorder %s20, 1
        %s154 = scalar_select %p153, %s20, 1
        %p155 = scmp.lt.s32.totalorder %s152, 15
        %s156 = scalar_select %p155, %s152, 15
        %s157 = smul.addr %s154, 16
        %s158 = sadd.s32 %s156, %s157
        %s159 = smul.addr %s158, 8
        %s160 = scalar_lea.vmem %s0, %s159
        %p161 = pneg %p51
        %p162 = pneg %p48
        %p163 = scmp.lt.s32.totalorder %s20, 1
        %s164 = scalar_select %p163, %s20, 1
        %s165 = smul.addr %s164, 16
        %s166 = smul.addr %s165, 8
        %s167 = scalar_lea.vmem %s1, %s166
        %p168 = pneg %p77
        %p169 = pneg %p74
        %p170 = pneg %p105
        %p171 = pneg %p102
        %s172 = sand.u32 %s92, 1
        %s173 = scalar_lea.sflag [#allocation3], %s172
        %s174 = sand.u32 %s92, 1
        %s175 = smul.addr %s174, 128
        %s176 = scalar_lea.vmem [#allocation2], %s175
        %s177 = smul.u32 16, %s21
        %p178 = scmp.lt.s32.totalorder %s20, 1
        %s179 = scalar_select %p178, %s20, 1
        %p180 = scmp.lt.s32.totalorder %s177, 15
        %s181 = scalar_select %p180, %s177, 15
        %s182 = smul.addr %s179, 16
        %s183 = sadd.s32 %s181, %s182
        %s184 = smul.addr %s183, 8
        %s185 = scalar_lea.vmem %s0, %s184
        %s186 = smul.u32 16, %s21
        %p187 = scmp.lt.s32.totalorder %s20, 1
        %s188 = scalar_select %p187, %s20, 1
        %s189 = smul.addr %s188, 16
        %s190 = smul.addr %s189, 8
        %s191 = scalar_lea.vmem %s1, %s190
        %s192 = smul.u32 16, %s21
        %v193 = vld [vmem:[%s185] sm:$0xff]
        %v194 = vld [vmem:[%s185 + $0x8] sm:$0xff]
        %v195 = vld [vmem:[%s185 + $0x10] sm:$0xff]
        %v196 = vld [vmem:[%s185 + $0x18] sm:$0xff]
        %v197 = vld [vmem:[%s185 + $0x20] sm:$0xff]
        %v198 = vld [vmem:[%s185 + $0x28] sm:$0xff]
        %v199 = vld [vmem:[%s185 + $0x30] sm:$0xff]
        %v200 = vld [vmem:[%s185 + $0x38] sm:$0xff]
        %v201 = vld [vmem:[%s185 + $0x40] sm:$0xff]
        %v202 = vld [vmem:[%s185 + $0x48] sm:$0xff]
        %v203 = vld [vmem:[%s185 + $0x50] sm:$0xff]
        %v204 = vld [vmem:[%s185 + $0x58] sm:$0xff]
        %v205 = vld [vmem:[%s185 + $0x60] sm:$0xff]
        %v206 = vld [vmem:[%s185 + $0x68] sm:$0xff]
        %v207 = vld [vmem:[%s185 + $0x70] sm:$0xff]
        %v208 = vld [vmem:[%s185 + $0x78] sm:$0xff]
        %v209 = vld [vmem:[%s191] sm:$0xff]
        %v210 = vld [vmem:[%s191 + $0x8] sm:$0xff]
        %v211 = vld [vmem:[%s191 + $0x10] sm:$0xff]
        %v212 = vld [vmem:[%s191 + $0x18] sm:$0xff]
        %v213 = vld [vmem:[%s191 + $0x20] sm:$0xff]
        %v214 = vld [vmem:[%s191 + $0x28] sm:$0xff]
        %v215 = vld [vmem:[%s191 + $0x30] sm:$0xff]
        %v216 = vld [vmem:[%s191 + $0x38] sm:$0xff]
        %v217 = vld [vmem:[%s191 + $0x40] sm:$0xff]
        %v218 = vld [vmem:[%s191 + $0x48] sm:$0xff]
        %v219 = vld [vmem:[%s191 + $0x50] sm:$0xff]
        %v220 = vld [vmem:[%s191 + $0x58] sm:$0xff]
        %v221 = vld [vmem:[%s191 + $0x60] sm:$0xff]
        %v222 = vld [vmem:[%s191 + $0x68] sm:$0xff]
        %v223 = vld [vmem:[%s191 + $0x70] sm:$0xff]
        %v224 = vld [vmem:[%s191 + $0x78] sm:$0xff]
        %vm225 = vcmask 23552
        %v227 = vsel %vm225, %v193, 0
        %v230 = vsel %vm225, %v194, 0
        %v233 = vsel %vm225, %v195, 0
        %v236 = vsel %vm225, %v196, 0
        %v239 = vsel %vm225, %v197, 0
        %v242 = vsel %vm225, %v198, 0
        %v245 = vsel %vm225, %v199, 0
        %v248 = vsel %vm225, %v200, 0
        %v251 = vsel %vm225, %v201, 0
        %v254 = vsel %vm225, %v202, 0
        %v257 = vsel %vm225, %v203, 0
        %v260 = vsel %vm225, %v204, 0
        %v263 = vsel %vm225, %v205, 0
        %v266 = vsel %vm225, %v206, 0
        %v269 = vsel %vm225, %v207, 0
        %v272 = vsel %vm225, %v208, 0
        %v275 = vsel %vm225, %v209, 0
        %v278 = vsel %vm225, %v210, 0
        %v281 = vsel %vm225, %v211, 0
        %v284 = vsel %vm225, %v212, 0
        %v287 = vsel %vm225, %v213, 0
        %v290 = vsel %vm225, %v214, 0
        %v293 = vsel %vm225, %v215, 0
        %v296 = vsel %vm225, %v216, 0
        %v299 = vsel %vm225, %v217, 0
        %v302 = vsel %vm225, %v218, 0
        %v305 = vsel %vm225, %v219, 0
        %v308 = vsel %vm225, %v220, 0
        %v311 = vsel %vm225, %v221, 0
        %v314 = vsel %vm225, %v222, 0
        %v317 = vsel %vm225, %v223, 0
        %v320 = vsel %vm225, %v224, 0
        %322 = vmatprep.subr.mxu0 0.0
        %323 = vmatpush1.xpose.msra.mxu0 %v320
        %324 = vmatprep.subr.mxu0 0.0
        %325 = vmatpush1.xpose.msra.mxu0 %v317
        %326 = vmatprep.subr.mxu0 0.0
        %327 = vmatpush1.xpose.msra.mxu0 %v314
        %328 = vmatprep.subr.mxu0 0.0
        %329 = vmatpush1.xpose.msra.mxu0 %v311
        %330 = vmatprep.subr.mxu0 0.0
        %331 = vmatpush1.xpose.msra.mxu0 %v308
        %332 = vmatprep.subr.mxu0 0.0
        %333 = vmatpush1.xpose.msra.mxu0 %v305
        %334 = vmatprep.subr.mxu0 0.0
        %335 = vmatpush1.xpose.msra.mxu0 %v302
        %336 = vmatprep.subr.mxu0 0.0
        %337 = vmatpush1.xpose.msra.mxu0 %v299
        %338 = vmatprep.subr.mxu0 0.0
        %339 = vmatpush1.xpose.msra.mxu0 %v296
        %340 = vmatprep.subr.mxu0 0.0
        %341 = vmatpush1.xpose.msra.mxu0 %v293
        %342 = vmatprep.subr.mxu0 0.0
        %343 = vmatpush1.xpose.msra.mxu0 %v290
        %344 = vmatprep.subr.mxu0 0.0
        %345 = vmatpush1.xpose.msra.mxu0 %v287
        %346 = vmatprep.subr.mxu0 0.0
        %347 = vmatpush1.xpose.msra.mxu0 %v284
        %348 = vmatprep.subr.mxu0 0.0
        %349 = vmatpush1.xpose.msra.mxu0 %v281
        %350 = vmatprep.subr.mxu0 0.0
        %351 = vmatpush1.xpose.msra.mxu0 %v278
        %352 = vmatprep.subr.mxu0 0.0
        %353 = vmatpush1.xpose.msra.mxu0 %v275
        %354 = vmatprep.subr.mxu0 0.0
        %355 = vmatpush2.xpose.msra.mxu0 0.0
        %356 = vmatprep.subr.mxu0 0.0
        %357 = vmatpush2.xpose.msra.mxu0 0.0
        %358 = vmatprep.subr.mxu0 0.0
        %359 = vmatpush2.xpose.msra.mxu0 0.0
        %360 = vmatprep.subr.mxu0 0.0
        %361 = vmatpush2.xpose.msra.mxu0 0.0
        %362 = vmatprep.subr.mxu0 0.0
        %363 = vmatpush2.xpose.msra.mxu0 0.0
        %364 = vmatprep.subr.mxu0 0.0
        %365 = vmatpush2.xpose.msra.mxu0 0.0
        %366 = vmatprep.subr.mxu0 0.0
        %367 = vmatpush2.xpose.msra.mxu0 0.0
        %368 = vmatprep.subr.mxu0 0.0
        %369 = vmatpush2.xpose.msra.mxu0 0.0
        %370 = vmatprep.subr.mxu0 0.0
        %371 = vmatpush2.xpose.msra.mxu0 0.0
        %372 = vmatprep.subr.mxu0 0.0
        %373 = vmatpush2.xpose.msra.mxu0 0.0
        %374 = vmatprep.subr.mxu0 0.0
        %375 = vmatpush2.xpose.msra.mxu0 0.0
        %376 = vmatprep.subr.mxu0 0.0
        %377 = vmatpush2.xpose.msra.mxu0 0.0
        %378 = vmatprep.subr.mxu0 0.0
        %379 = vmatpush2.xpose.msra.mxu0 0.0
        %380 = vmatprep.subr.mxu0 0.0
        %381 = vmatpush2.xpose.msra.mxu0 0.0
        %382 = vmatprep.subr.mxu0 0.0
        %383 = vmatpush2.xpose.msra.mxu0 0.0
        %384 = vmatprep.subr.mxu0 0.0
        %385 = vmatpush2.xpose.msra.mxu0 0.0
        %386 = vmatprep.mubr.f32.mxu0 0.0
        %387 = vmatmul.mubr.f32.gmra.mxu0 %v227
        %v388 = vpop.f32.mrf.mxu0
        %v389 = vadd.f32 0.0, %v388
        %v390 = vpop.f32.mrf.mxu0
        %391 = vmatprep.mubr.f32.mxu0 0.0
        %392 = vmatmul.mubr.f32.gmra.mxu0 %v230
        %v393 = vpop.f32.mrf.mxu0
        %v394 = vadd.f32 0.0, %v393
        %v395 = vpop.f32.mrf.mxu0
        %396 = vmatprep.mubr.f32.mxu0 0.0
        %397 = vmatmul.mubr.f32.gmra.mxu0 %v233
        %v398 = vpop.f32.mrf.mxu0
        %v399 = vadd.f32 0.0, %v398
        %v400 = vpop.f32.mrf.mxu0
        %401 = vmatprep.mubr.f32.mxu0 0.0
        %402 = vmatmul.mubr.f32.gmra.mxu0 %v236
        %v403 = vpop.f32.mrf.mxu0
        %v404 = vadd.f32 0.0, %v403
        %v405 = vpop.f32.mrf.mxu0
        %406 = vmatprep.mubr.f32.mxu0 0.0
        %407 = vmatmul.mubr.f32.gmra.mxu0 %v239
        %v408 = vpop.f32.mrf.mxu0
        %v409 = vadd.f32 0.0, %v408
        %v410 = vpop.f32.mrf.mxu0
        %411 = vmatprep.mubr.f32.mxu0 0.0
        %412 = vmatmul.mubr.f32.gmra.mxu0 %v242
        %v413 = vpop.f32.mrf.mxu0
        %v414 = vadd.f32 0.0, %v413
        %v415 = vpop.f32.mrf.mxu0
        %416 = vmatprep.mubr.f32.mxu0 0.0
        %417 = vmatmul.mubr.f32.gmra.mxu0 %v245
        %v418 = vpop.f32.mrf.mxu0
        %v419 = vadd.f32 0.0, %v418
        %v420 = vpop.f32.mrf.mxu0
        %421 = vmatprep.mubr.f32.mxu0 0.0
        %422 = vmatmul.mubr.f32.gmra.mxu0 %v248
        %v423 = vpop.f32.mrf.mxu0
        %v424 = vadd.f32 0.0, %v423
        %v425 = vpop.f32.mrf.mxu0
        %426 = vmatprep.mubr.f32.mxu0 0.0
        %427 = vmatmul.mubr.f32.gmra.mxu0 %v251
        %v428 = vpop.f32.mrf.mxu0
        %v429 = vadd.f32 0.0, %v428
        %v430 = vpop.f32.mrf.mxu0
        %431 = vmatprep.mubr.f32.mxu0 0.0
        %432 = vmatmul.mubr.f32.gmra.mxu0 %v254
        %v433 = vpop.f32.mrf.mxu0
        %v434 = vadd.f32 0.0, %v433
        %v435 = vpop.f32.mrf.mxu0
        %436 = vmatprep.mubr.f32.mxu0 0.0
        %437 = vmatmul.mubr.f32.gmra.mxu0 %v257
        %v438 = vpop.f32.mrf.mxu0
        %v439 = vadd.f32 0.0, %v438
        %v440 = vpop.f32.mrf.mxu0
        %441 = vmatprep.mubr.f32.mxu0 0.0
        %442 = vmatmul.mubr.f32.gmra.mxu0 %v260
        %v443 = vpop.f32.mrf.mxu0
        %v444 = vadd.f32 0.0, %v443
        %v445 = vpop.f32.mrf.mxu0
        %446 = vmatprep.mubr.f32.mxu0 0.0
        %447 = vmatmul.mubr.f32.gmra.mxu0 %v263
        %v448 = vpop.f32.mrf.mxu0
        %v449 = vadd.f32 0.0, %v448
        %v450 = vpop.f32.mrf.mxu0
        %451 = vmatprep.mubr.f32.mxu0 0.0
        %452 = vmatmul.mubr.f32.gmra.mxu0 %v266
        %v453 = vpop.f32.mrf.mxu0
        %v454 = vadd.f32 0.0, %v453
        %v455 = vpop.f32.mrf.mxu0
        %456 = vmatprep.mubr.f32.mxu0 0.0
        %457 = vmatmul.mubr.f32.gmra.mxu0 %v269
        %v458 = vpop.f32.mrf.mxu0
        %v459 = vadd.f32 0.0, %v458
        %v460 = vpop.f32.mrf.mxu0
        %461 = vmatprep.mubr.f32.mxu0 0.0
        %462 = vmatmul.mubr.f32.gmra.mxu0 %v272
        %v463 = vpop.f32.mrf.mxu0
        %v464 = vadd.f32 0.0, %v463
        %v465 = vpop.f32.mrf.mxu0
        %466 = vdwg.mxu0
        %v467 = vmul.f32 %v193, %v193
        %v468 = vmul.f32 %v194, %v194
        %v469 = vmul.f32 %v195, %v195
        %v470 = vmul.f32 %v196, %v196
        %v471 = vmul.f32 %v197, %v197
        %v472 = vmul.f32 %v198, %v198
        %v473 = vmul.f32 %v199, %v199
        %v474 = vmul.f32 %v200, %v200
        %v475 = vmul.f32 %v201, %v201
        %v476 = vmul.f32 %v202, %v202
        %v477 = vmul.f32 %v203, %v203
        %v478 = vmul.f32 %v204, %v204
        %v479 = vmul.f32 %v205, %v205
        %v480 = vmul.f32 %v206, %v206
        %v481 = vmul.f32 %v207, %v207
        %v482 = vmul.f32 %v208, %v208
        %v483 = vsel %vm225, %v467, 0.0
        %484 = vadd.xlane.f32.xlu0 %v483
        %v485 = vpop.xlane.xlu0 %484
        %v486 = vsel %vm225, %v468, 0.0
        %487 = vadd.xlane.f32.xlu0 %v486
        %v488 = vpop.xlane.xlu0 %487
        %v489 = vsel %vm225, %v469, 0.0
        %490 = vadd.xlane.f32.xlu0 %v489
        %v491 = vpop.xlane.xlu0 %490
        %v492 = vsel %vm225, %v470, 0.0
        %493 = vadd.xlane.f32.xlu0 %v492
        %v494 = vpop.xlane.xlu0 %493
        %v495 = vsel %vm225, %v471, 0.0
        %496 = vadd.xlane.f32.xlu0 %v495
        %v497 = vpop.xlane.xlu0 %496
        %v498 = vsel %vm225, %v472, 0.0
        %499 = vadd.xlane.f32.xlu0 %v498
        %v500 = vpop.xlane.xlu0 %499
        %v501 = vsel %vm225, %v473, 0.0
        %502 = vadd.xlane.f32.xlu0 %v501
        %v503 = vpop.xlane.xlu0 %502
        %v504 = vsel %vm225, %v474, 0.0
        %505 = vadd.xlane.f32.xlu0 %v504
        %v506 = vpop.xlane.xlu0 %505
        %v507 = vsel %vm225, %v475, 0.0
        %508 = vadd.xlane.f32.xlu0 %v507
        %v509 = vpop.xlane.xlu0 %508
        %v510 = vsel %vm225, %v476, 0.0
        %511 = vadd.xlane.f32.xlu0 %v510
        %v512 = vpop.xlane.xlu0 %511
        %v513 = vsel %vm225, %v477, 0.0
        %514 = vadd.xlane.f32.xlu0 %v513
        %v515 = vpop.xlane.xlu0 %514
        %v516 = vsel %vm225, %v478, 0.0
        %517 = vadd.xlane.f32.xlu0 %v516
        %v518 = vpop.xlane.xlu0 %517
        %v519 = vsel %vm225, %v479, 0.0
        %520 = vadd.xlane.f32.xlu0 %v519
        %v521 = vpop.xlane.xlu0 %520
        %v522 = vsel %vm225, %v480, 0.0
        %523 = vadd.xlane.f32.xlu0 %v522
        %v524 = vpop.xlane.xlu0 %523
        %v525 = vsel %vm225, %v481, 0.0
        %526 = vadd.xlane.f32.xlu0 %v525
        %v527 = vpop.xlane.xlu0 %526
        %v528 = vsel %vm225, %v482, 0.0
        %529 = vadd.xlane.f32.xlu0 %v528
        %v530 = vpop.xlane.xlu0 %529
        %v531 = vmul.f32 %v209, %v209
        %v532 = vmul.f32 %v210, %v210
        %v533 = vmul.f32 %v211, %v211
        %v534 = vmul.f32 %v212, %v212
        %v535 = vmul.f32 %v213, %v213
        %v536 = vmul.f32 %v214, %v214
        %v537 = vmul.f32 %v215, %v215
        %v538 = vmul.f32 %v216, %v216
        %v539 = vmul.f32 %v217, %v217
        %v540 = vmul.f32 %v218, %v218
        %v541 = vmul.f32 %v219, %v219
        %v542 = vmul.f32 %v220, %v220
        %v543 = vmul.f32 %v221, %v221
        %v544 = vmul.f32 %v222, %v222
        %v545 = vmul.f32 %v223, %v223
        %v546 = vmul.f32 %v224, %v224
        %v547 = vsel %vm225, %v531, 0.0
        %548 = vadd.xlane.f32.xlu0 %v547
        %v549 = vpop.xlane.xlu0 %548
        %v550 = vsel %vm225, %v532, 0.0
        %551 = vadd.xlane.f32.xlu0 %v550
        %v552 = vpop.xlane.xlu0 %551
        %v553 = vsel %vm225, %v533, 0.0
        %554 = vadd.xlane.f32.xlu0 %v553
        %v555 = vpop.xlane.xlu0 %554
        %v556 = vsel %vm225, %v534, 0.0
        %557 = vadd.xlane.f32.xlu0 %v556
        %v558 = vpop.xlane.xlu0 %557
        %v559 = vsel %vm225, %v535, 0.0
        %560 = vadd.xlane.f32.xlu0 %v559
        %v561 = vpop.xlane.xlu0 %560
        %v562 = vsel %vm225, %v536, 0.0
        %563 = vadd.xlane.f32.xlu0 %v562
        %v564 = vpop.xlane.xlu0 %563
        %v565 = vsel %vm225, %v537, 0.0
        %566 = vadd.xlane.f32.xlu0 %v565
        %v567 = vpop.xlane.xlu0 %566
        %v568 = vsel %vm225, %v538, 0.0
        %569 = vadd.xlane.f32.xlu0 %v568
        %v570 = vpop.xlane.xlu0 %569
        %v571 = vsel %vm225, %v539, 0.0
        %572 = vadd.xlane.f32.xlu0 %v571
        %v573 = vpop.xlane.xlu0 %572
        %v574 = vsel %vm225, %v540, 0.0
        %575 = vadd.xlane.f32.xlu0 %v574
        %v576 = vpop.xlane.xlu0 %575
        %v577 = vsel %vm225, %v541, 0.0
        %578 = vadd.xlane.f32.xlu0 %v577
        %v579 = vpop.xlane.xlu0 %578
        %v580 = vsel %vm225, %v542, 0.0
        %581 = vadd.xlane.f32.xlu0 %v580
        %v582 = vpop.xlane.xlu0 %581
        %v583 = vsel %vm225, %v543, 0.0
        %584 = vadd.xlane.f32.xlu0 %v583
        %v585 = vpop.xlane.xlu0 %584
        %v586 = vsel %vm225, %v544, 0.0
        %587 = vadd.xlane.f32.xlu0 %v586
        %v588 = vpop.xlane.xlu0 %587
        %v589 = vsel %vm225, %v545, 0.0
        %590 = vadd.xlane.f32.xlu0 %v589
        %v591 = vpop.xlane.xlu0 %590
        %v592 = vsel %vm225, %v546, 0.0
        %593 = vadd.xlane.f32.xlu0 %v592
        %v594 = vpop.xlane.xlu0 %593
        %v595 = vmul.f32 %v389, 2.0
        %v596 = vmul.f32 %v394, 2.0
        %v597 = vmul.f32 %v399, 2.0
        %v598 = vmul.f32 %v404, 2.0
        %v599 = vmul.f32 %v409, 2.0
        %v600 = vmul.f32 %v414, 2.0
        %v601 = vmul.f32 %v419, 2.0
        %v602 = vmul.f32 %v424, 2.0
        %v603 = vmul.f32 %v429, 2.0
        %v604 = vmul.f32 %v434, 2.0
        %v605 = vmul.f32 %v439, 2.0
        %v606 = vmul.f32 %v444, 2.0
        %v607 = vmul.f32 %v449, 2.0
        %v608 = vmul.f32 %v454, 2.0
        %v609 = vmul.f32 %v459, 2.0
        %v610 = vmul.f32 %v464, 2.0
        %v611 = vsub.f32 %v595, %v485
        %v612 = vsub.f32 %v596, %v488
        %v613 = vsub.f32 %v597, %v491
        %v614 = vsub.f32 %v598, %v494
        %v615 = vsub.f32 %v599, %v497
        %v616 = vsub.f32 %v600, %v500
        %v617 = vsub.f32 %v601, %v503
        %v618 = vsub.f32 %v602, %v506
        %v619 = vsub.f32 %v603, %v509
        %v620 = vsub.f32 %v604, %v512
        %v621 = vsub.f32 %v605, %v515
        %v622 = vsub.f32 %v606, %v518
        %v623 = vsub.f32 %v607, %v521
        %v624 = vsub.f32 %v608, %v524
        %v625 = vsub.f32 %v609, %v527
        %v626 = vsub.f32 %v610, %v530
        %627 = vxpose.xlu0.b32.start [1/16] %v549, 128
        %628 = vxpose.xlu0.b32.cont [2/16] %v552, 128
        %629 = vxpose.xlu0.b32.cont [3/16] %v555, 128
        %630 = vxpose.xlu0.b32.cont [4/16] %v558, 128
        %631 = vxpose.xlu0.b32.cont [5/16] %v561, 128
        %632 = vxpose.xlu0.b32.cont [6/16] %v564, 128
        %633 = vxpose.xlu0.b32.cont [7/16] %v567, 128
        %634 = vxpose.xlu0.b32.cont [8/16] %v570, 128
        %635 = vxpose.xlu0.b32.cont [9/16] %v573, 128
        %636 = vxpose.xlu0.b32.cont [10/16] %v576, 128
        %637 = vxpose.xlu0.b32.cont [11/16] %v579, 128
        %638 = vxpose.xlu0.b32.cont [12/16] %v582, 128
        %639 = vxpose.xlu0.b32.cont [13/16] %v585, 128
        %640 = vxpose.xlu0.b32.cont [14/16] %v588, 128
        %641 = vxpose.xlu0.b32.cont [15/16] %v591, 128
        %642 = vxpose.xlu0.b32.end [16/16] %v594, 128
        %v643 = vpop.trf.xlu0
        %v644 = vpop.trf.xlu0
        %v645 = vpop.trf.xlu0
        %v646 = vpop.trf.xlu0
        %v647 = vpop.trf.xlu0
        %v648 = vpop.trf.xlu0
        %v649 = vpop.trf.xlu0
        %v650 = vpop.trf.xlu0
        %v651 = vpop.trf.xlu0
        %v652 = vpop.trf.xlu0
        %v653 = vpop.trf.xlu0
        %v654 = vpop.trf.xlu0
        %v655 = vpop.trf.xlu0
        %v656 = vpop.trf.xlu0
        %v657 = vpop.trf.xlu0
        %v658 = vpop.trf.xlu0
        %v659 = vlaneseq
        %v660 = vshrl.u32 %v659, 7
        %v661 = vsub.s32 0, %v660
        %v662 = vrot.slane %v643, %v661
        %v663 = vsub.f32 %v611, %v662
        %v664 = vsub.f32 %v612, %v662
        %v665 = vsub.f32 %v613, %v662
        %v666 = vsub.f32 %v614, %v662
        %v667 = vsub.f32 %v615, %v662
        %v668 = vsub.f32 %v616, %v662
        %v669 = vsub.f32 %v617, %v662
        %v670 = vsub.f32 %v618, %v662
        %v671 = vsub.f32 %v619, %v662
        %v672 = vsub.f32 %v620, %v662
        %v673 = vsub.f32 %v621, %v662
        %v674 = vsub.f32 %v622, %v662
        %v675 = vsub.f32 %v623, %v662
        %v676 = vsub.f32 %v624, %v662
        %v677 = vsub.f32 %v625, %v662
        %v678 = vsub.f32 %v626, %v662
        %v679 = vlaneseq
        %v680 = vand.u32 %v679, 127
        %vm681 = vcmp.lt.s32.totalorder %v680, 16
        %v682 = vsel %vm681, %v663, -1e+30
        %v683 = vsel %vm681, %v664, -1e+30
        %v684 = vsel %vm681, %v665, -1e+30
        %v685 = vsel %vm681, %v666, -1e+30
        %v686 = vsel %vm681, %v667, -1e+30
        %v687 = vsel %vm681, %v668, -1e+30
        %v688 = vsel %vm681, %v669, -1e+30
        %v689 = vsel %vm681, %v670, -1e+30
        %v690 = vsel %vm681, %v671, -1e+30
        %v691 = vsel %vm681, %v672, -1e+30
        %v692 = vsel %vm681, %v673, -1e+30
        %v693 = vsel %vm681, %v674, -1e+30
        %v694 = vsel %vm681, %v675, -1e+30
        %v695 = vsel %vm681, %v676, -1e+30
        %v696 = vsel %vm681, %v677, -1e+30
        %v697 = vsel %vm681, %v678, -1e+30
        %698 = vst [vmem:[%s176] sm:$0xff] %v682
        %699 = vst [vmem:[%s176 + $0x8] sm:$0xff] %v683
        %700 = vst [vmem:[%s176 + $0x10] sm:$0xff] %v684
        %701 = vst [vmem:[%s176 + $0x18] sm:$0xff] %v685
        %702 = vst [vmem:[%s176 + $0x20] sm:$0xff] %v686
        %703 = vst [vmem:[%s176 + $0x28] sm:$0xff] %v687
        %704 = vst [vmem:[%s176 + $0x30] sm:$0xff] %v688
        %705 = vst [vmem:[%s176 + $0x38] sm:$0xff] %v689
        %706 = vst [vmem:[%s176 + $0x40] sm:$0xff] %v690
        %707 = vst [vmem:[%s176 + $0x48] sm:$0xff] %v691
        %708 = vst [vmem:[%s176 + $0x50] sm:$0xff] %v692
        %709 = vst [vmem:[%s176 + $0x58] sm:$0xff] %v693
        %710 = vst [vmem:[%s176 + $0x60] sm:$0xff] %v694
        %711 = vst [vmem:[%s176 + $0x68] sm:$0xff] %v695
        %712 = vst [vmem:[%s176 + $0x70] sm:$0xff] %v696
        %713 = vst [vmem:[%s176 + $0x78] sm:$0xff] %v697
        %s714 = sand.u32 %s92, 1
        %s715 = scalar_lea.sflag [#allocation3], %s714
        %s716 = sand.u32 %s92, 1
        %s717 = smul.addr %s716, 128
        %s718 = scalar_lea.vmem [#allocation2], %s717
        // Predicated region
        $region29: #{tpu_custom_call.1} parent=27 // pred_check
          %p719 = pneg %p102
        $region30: #{tpu_custom_call.1} parent=27 // pred_check_branch
          %721 = sbr.rel (%p719) target = $region32
        $region31: #{tpu_custom_call.1} parent=27 // pred_region
          %s722 = smul.u32 16, %s21
          %s724 = ssub.s32 2048, 2048
          %725 = vsyncadd %s715, %s724
          %s726 = smul.addr %s20, 16
          %s727 = sadd.s32 %s722, %s726
          %s728 = smul.addr %s727, 128
          %s729 = scalar_lea.hbm %s2, %s728
          %s730 = sshll.u32 %s718, 4
          %s731 = int_to_ptr.vmem [resolvable:$true] %s730
          %736 = dma.vmem_to_hbm [thread:$0]  %s731, 2048, %s729, %s715, 128, 128, 8
        $region32: #{tpu_custom_call.1} parent=27 // pred_fallthru
          _
      $region28: #{tpu_custom_call.1} parent=5 // pred_fallthru
        _
      %p737 = scmp.le.s32.totalorder 2, %s11
      // Predicated region
      $region33: #{tpu_custom_call.1} parent=5 // pred_check
        %p738 = pneg %p737
      $region34: #{tpu_custom_call.1} parent=5 // pred_check_branch
        %740 = sbr.rel (%p738) target = $region36
      $region35: #{tpu_custom_call.1} parent=5 // pred_region
        %s741 = ssub.s32 %s11, 2
        // Predicated region
        $region37: #{tpu_custom_call.1} parent=35 // pred_check
          %p742 = pneg %p108
        $region38: #{tpu_custom_call.1} parent=35 // pred_check_branch
          %744 = sbr.rel (%p742) target = $region40
        $region39: #{tpu_custom_call.1} parent=35 // pred_region
          %s745 = sand.u32 %s93, 1
          %s746 = scalar_lea.sflag [#allocation3], %s745
          %s747 = sand.u32 %s93, 1
          %s748 = smul.addr %s747, 128
          %s749 = scalar_lea.vmem [#allocation2], %s748
          %750 = dma.done %s746, 2048
        $region40: #{tpu_custom_call.1} parent=35 // pred_fallthru
          _
      $region36: #{tpu_custom_call.1} parent=5 // pred_fallthru
        _
    $region6: #{tpu_custom_call.1} parent=1 // loop_footer
      %s15 = sadd.s32 1, %s11
    $region7: #{tpu_custom_call.1} parent=1 // loop_footer_branch
      %10 = sbr.rel target = $region3
    $region8: #{tpu_custom_call.1} parent=1 // loop_exit
      _
    %751 = vsyncpa [#allocation3], 1
    %s752 = scalar_lea.sflag [#allocation3], 1
    %753 = vsyncpa %s752, 1

</llo_original>
